<compile_context>
chip_gen: v6e
topology: v6e:2x2x1
jax: 0.10.0
libtpu: 0.0.40
codegen_flags: <defaults>
</compile_context>

<pallas_src>
import functools

import jax
import jax.numpy as jnp
from jax.experimental import pallas as pl
from jax.experimental.pallas import tpu as pltpu


# ----------------------------- Pallas kernel -------------------------------

def actor_critic_kernel(x_ref, w1_ref, w2_ref, w3_ref, b_ref, out_ref, *, action_dim):
    x = x_ref[...]                      # (TILE_B, S) bf16

    b1 = b_ref[0:1, :]                  # (1, 256) f32
    b2 = b_ref[1:2, 0:128]              # (1, 128) f32
    b3 = b_ref[2:3, 0:128]              # (1, 128) f32

    # Layer 1: shared actor+critic matmul, tanh on both halves.
    h1 = jnp.tanh(
        jnp.dot(x, w1_ref[...], preferred_element_type=jnp.float32) + b1
    )                                   # (TILE_B, 256) f32

    # Layer 2: block-diagonal weights, tanh on both halves.
    h2 = jnp.tanh(
        jnp.dot(h1.astype(jnp.bfloat16), w2_ref[...],
                preferred_element_type=jnp.float32) + b2
    )                                   # (TILE_B, 128) f32

    # Layer 3: block-diagonal, lanes [0,A) = actor pre-activation, lane A = value.
    h3 = (
        jnp.dot(h2.astype(jnp.bfloat16), w3_ref[...],
                preferred_element_type=jnp.float32) + b3
    )                                   # (TILE_B, 128) f32

    # Actor lanes get tanh (already in [-1,1] -> the torch clamp is redundant);
    # lane `action_dim` is the linear critic value; padding lanes stay zero.
    lane = jax.lax.broadcasted_iota(jnp.int32, h3.shape, 1)
    out_ref[...] = jnp.where(lane < action_dim, jnp.tanh(h3), h3)


# ------------------------------ Host wrapper --------------------------------

def actor_critic_forward(x, packed_params, action_dim):
    """Fused forward pass. x: (B, state_dim) f32. Returns (mean, cov_mat, value)."""
    w1, w2, w3, bias = packed_params
    B, S = x.shape
    OUT = 128
    assert action_dim + 1 <= OUT

    # Batch tiling: big tiles for real rollout batches, padded multiple-of-8 for
    # tiny ones (8 sublanes is the minimum f32 tile height).
    if B >= 512:
        tile_b = 512
    else:
        tile_b = max(8, ((B + 7) // 8) * 8)
    b_pad = ((B + tile_b - 1) // tile_b) * tile_b

    xb = x.astype(jnp.bfloat16)
    if b_pad != B:
        xb = jnp.pad(xb, ((0, b_pad - B), (0, 0)))

    grid = (b_pad // tile_b,)

    flops = 2 * b_pad * (S * 256 + 256 * 128 + 128 * 128)
    transcendentals = b_pad * (256 + 128 + 128)
    bytes_accessed = (
        xb.size * 2 + w1.size * 2 + w2.size * 2 + w3.size * 2
        + bias.size * 4 + b_pad * OUT * 4
    )

    out = pl.pallas_call(
        functools.partial(actor_critic_kernel, action_dim=action_dim),
        out_shape=jax.ShapeDtypeStruct((b_pad, OUT), jnp.float32),
        grid=grid,
        in_specs=[
            pl.BlockSpec((tile_b, S), lambda i: (i, 0)),     # x tile (pipelined)
            pl.BlockSpec((S, 256), lambda i: (0, 0)),        # W1 resident
            pl.BlockSpec((256, 128), lambda i: (0, 0)),      # W2 resident
            pl.BlockSpec((128, 128), lambda i: (0, 0)),      # W3 resident
            pl.BlockSpec((3, 256), lambda i: (0, 0)),        # packed biases resident
        ],
        out_specs=pl.BlockSpec((tile_b, OUT), lambda i: (i, 0)),
        compiler_params=pltpu.CompilerParams(
            dimension_semantics=("parallel",)),
        cost_estimate=pl.CostEstimate(
            flops=flops,
            transcendentals=transcendentals,
            bytes_accessed=bytes_accessed),
    )(xb, w1, w2, w3, bias)

    mean = out[:B, :action_dim]
    value = out[:B, action_dim:action_dim + 1]
    # Constant covariance matrix diag(action_var = 0.5) -- pure glue, no compute.
    cov_mat = jnp.diag(jnp.full((action_dim,), 0.5, dtype=jnp.float32))
    return mean, cov_mat, value


# --------------------------- Parameter construction -------------------------

def make_raw_params(key, state_dim, action_dim):
    """Deterministic init matching the PyTorch module: orthogonal(gain=0.01)
    weights, zero biases. PyTorch Linear weight is (out, in); we store (in, out)."""
    ortho = jax.nn.initializers.orthogonal(scale=0.01)

    def linear(k, in_dim, out_dim):
        w = ortho(k, (out_dim, in_dim), jnp.float32).T   # (in, out)
        b = jnp.zeros((out_dim,), jnp.float32)
        return w, b

    ks = jax.random.split(key, 6)
    aw1, ab1 = linear(ks[0], state_dim, 128)
    aw2, ab2 = linear(ks[1], 128, 64)
    aw3, ab3 = linear(ks[2], 64, action_dim)
    cw1, cb1 = linear(ks[3], state_dim, 128)
    cw2, cb2 = linear(ks[4], 128, 64)
    cw3, cb3 = linear(ks[5], 64, 1)
    return dict(
        aw1=aw1, ab1=ab1, aw2=aw2, ab2=ab2, aw3=aw3, ab3=ab3,
        cw1=cw1, cb1=cb1, cw2=cw2, cb2=cb2, cw3=cw3, cb3=cb3,
    )


def pack_params(p, action_dim):
    """Pack actor+critic into 3 fused weight matrices (bf16) and one bias array (f32)."""
    A = action_dim

    # Layer 1: shared input, concatenated outputs -> (S, 256).
    w1 = jnp.concatenate([p["aw1"], p["cw1"]], axis=1)

    # Layer 2: block-diagonal (256, 128).
    w2 = jnp.zeros((256, 128), jnp.float32)
    w2 = w2.at[:128, :64].set(p["aw2"]).at[128:, 64:128].set(p["cw2"])

    # Layer 3: block-diagonal, zero-padded to 128 lanes.
    w3 = jnp.zeros((128, 128), jnp.float32)
    w3 = w3.at[:64, :A].set(p["aw3"]).at[64:128, A:A + 1].set(p["cw3"])

    # Biases packed into a single (3, 256) f32 array.
    b = jnp.zeros((3, 256), jnp.float32)
    b = b.at[0, :].set(jnp.concatenate([p["ab1"], p["cb1"]]))
    b = b.at[1, :64].set(p["ab2"]).at[1, 64:128].set(p["cb2"])
    b = b.at[2, :A].set(p["ab3"]).at[2, A:A + 1].set(p["cb3"])

    return (w1.astype(jnp.bfloat16), w2.astype(jnp.bfloat16),
            w3.astype(jnp.bfloat16), b)


# ----------------------------------- Main ------------------------------------

if __name__ == "__main__":
    B, STATE_DIM, ACTION_DIM = 8, 32, 4

    key = jax.random.PRNGKey(0)
    pkey, xkey = jax.random.split(key)
    raw = make_raw_params(pkey, STATE_DIM, ACTION_DIM)
    packed = pack_params(raw, ACTION_DIM)
    x = jax.random.normal(xkey, (B, STATE_DIM), dtype=jnp.float32)

    mean, cov_mat, value = actor_critic_forward(x, packed, ACTION_DIM)
    jax.block_until_ready((mean, cov_mat, value))

    # Pure-JAX f32 reference (original 6-layer structure) for a sanity check.
    def ref(x, p):
        h = jnp.tanh(x @ p["aw1"] + p["ab1"])
        h = jnp.tanh(h @ p["aw2"] + p["ab2"])
        m = jnp.clip(jnp.tanh(h @ p["aw3"] + p["ab3"]), -1.0, 1.0)
        g = jnp.tanh(x @ p["cw1"] + p["cb1"])
        g = jnp.tanh(g @ p["cw2"] + p["cb2"])
        v = (g @ p["cw3"] + p["cb3"]).reshape(-1, 1)
        return m, v

    m_ref, v_ref = ref(x, raw)
    assert mean.shape == (B, ACTION_DIM)
    assert cov_mat.shape == (ACTION_DIM, ACTION_DIM)
    assert value.shape == (B, 1)
    # bf16 matmul inputs -> loosen tolerance vs f32 reference.
    assert jnp.allclose(mean, m_ref, atol=2e-3, rtol=2e-2)
    assert jnp.allclose(value, v_ref, atol=2e-3, rtol=2e-2)
    assert jnp.allclose(cov_mat, jnp.diag(jnp.full((ACTION_DIM,), 0.5)))

    print("KERNEL_OK")
</pallas_src>

<mosaic_0001>
module attributes {stable_mosaic.version = 11 : i64} {
  func.func @actor_critic_kernel(%arg0: i32, %arg1: memref<8x32xbf16, #tpu.memory_space<vmem>>, %arg2: memref<32x256xbf16, #tpu.memory_space<vmem>>, %arg3: memref<256x128xbf16, #tpu.memory_space<vmem>>, %arg4: memref<128x128xbf16, #tpu.memory_space<vmem>>, %arg5: memref<3x256xf32, #tpu.memory_space<vmem>>, %arg6: memref<8x128xf32, #tpu.memory_space<vmem>>) attributes {dimension_semantics = [#tpu.dimension_semantics<parallel>], iteration_bounds = array<i64: 1>, scalar_prefetch = 0 : i64, scratch_operands = 0 : i64, tpu.core_type = #tpu.core_type<tc>, window_params = [{transform_indices = @transform_0, window_bounds = array<i64: 8, 32>}, {pipeline_mode = #tpu.pipeline_mode<synchronous>, transform_indices = @transform_1, window_bounds = array<i64: 32, 256>}, {pipeline_mode = #tpu.pipeline_mode<synchronous>, transform_indices = @transform_2, window_bounds = array<i64: 256, 128>}, {pipeline_mode = #tpu.pipeline_mode<synchronous>, transform_indices = @transform_3, window_bounds = array<i64: 128, 128>}, {pipeline_mode = #tpu.pipeline_mode<synchronous>, transform_indices = @transform_4, window_bounds = array<i64: 3, 256>}, {transform_indices = @transform_5, window_bounds = array<i64: 8, 128>}]} {
    %c0 = arith.constant 0 : index
    %c0_0 = arith.constant 0 : index
    %0 = vector.load %arg1[%c0, %c0_0] : memref<8x32xbf16, #tpu.memory_space<vmem>>, vector<8x32xbf16>
    %c0_1 = arith.constant 0 : index
    %c0_2 = arith.constant 0 : index
    %1 = vector.load %arg5[%c0_1, %c0_2] : memref<3x256xf32, #tpu.memory_space<vmem>>, vector<1x256xf32>
    %c1 = arith.constant 1 : index
    %c0_3 = arith.constant 0 : index
    %2 = vector.load %arg5[%c1, %c0_3] : memref<3x256xf32, #tpu.memory_space<vmem>>, vector<1x128xf32>
    %c2 = arith.constant 2 : index
    %c0_4 = arith.constant 0 : index
    %3 = vector.load %arg5[%c2, %c0_4] : memref<3x256xf32, #tpu.memory_space<vmem>>, vector<1x128xf32>
    %c0_5 = arith.constant 0 : index
    %c0_6 = arith.constant 0 : index
    %4 = vector.load %arg2[%c0_5, %c0_6] : memref<32x256xbf16, #tpu.memory_space<vmem>>, vector<32x256xbf16>
    %cst = arith.constant dense<0.000000e+00> : vector<8x256xf32>
    %5 = tpu.matmul %0, %4, %cst {dimension_numbers = #tpu.dot_dimension_numbers<[1], [0], [0], [1], [0, 0, 1, 1], [], []>} : vector<8x32xbf16>, vector<32x256xbf16>, vector<8x256xf32> -> vector<8x256xf32>
    %6 = vector.broadcast %1 : vector<1x256xf32> to vector<8x256xf32>
    %7 = arith.addf %5, %6 : vector<8x256xf32>
    %8 = math.tanh %7 : vector<8x256xf32>
    %9 = arith.truncf %8 : vector<8x256xf32> to vector<8x256xbf16>
    %c0_7 = arith.constant 0 : index
    %c0_8 = arith.constant 0 : index
    %10 = vector.load %arg3[%c0_7, %c0_8] : memref<256x128xbf16, #tpu.memory_space<vmem>>, vector<256x128xbf16>
    %cst_9 = arith.constant dense<0.000000e+00> : vector<8x128xf32>
    %11 = tpu.matmul %9, %10, %cst_9 {dimension_numbers = #tpu.dot_dimension_numbers<[1], [0], [0], [1], [0, 0, 1, 1], [], []>} : vector<8x256xbf16>, vector<256x128xbf16>, vector<8x128xf32> -> vector<8x128xf32>
    %12 = vector.broadcast %2 : vector<1x128xf32> to vector<8x128xf32>
    %13 = arith.addf %11, %12 : vector<8x128xf32>
    %14 = math.tanh %13 : vector<8x128xf32>
    %15 = arith.truncf %14 : vector<8x128xf32> to vector<8x128xbf16>
    %c0_10 = arith.constant 0 : index
    %c0_11 = arith.constant 0 : index
    %16 = vector.load %arg4[%c0_10, %c0_11] : memref<128x128xbf16, #tpu.memory_space<vmem>>, vector<128x128xbf16>
    %cst_12 = arith.constant dense<0.000000e+00> : vector<8x128xf32>
    %17 = tpu.matmul %15, %16, %cst_12 {dimension_numbers = #tpu.dot_dimension_numbers<[1], [0], [0], [1], [0, 0, 1, 1], [], []>} : vector<8x128xbf16>, vector<128x128xbf16>, vector<8x128xf32> -> vector<8x128xf32>
    %18 = vector.broadcast %3 : vector<1x128xf32> to vector<8x128xf32>
    %19 = arith.addf %17, %18 : vector<8x128xf32>
    %20 = tpu.iota {dimensions = array<i32: 1>} : vector<8x128xi32>
    %c4_i32 = arith.constant 4 : i32
    %21 = vector.broadcast %c4_i32 : i32 to vector<8x128xi32>
    %22 = arith.cmpi slt, %20, %21 : vector<8x128xi32>
    %23 = math.tanh %19 : vector<8x128xf32>
    %24 = arith.select %22, %23, %19 : vector<8x128xi1>, vector<8x128xf32>
    %c0_13 = arith.constant 0 : index
    %c0_14 = arith.constant 0 : index
    %25 = vector.load %arg6[%c0_13, %c0_14] : memref<8x128xf32, #tpu.memory_space<vmem>>, vector<8x128xf32>
    tpu.vector_store %arg6[%c0_13, %c0_14], %24 {strides = array<i32>} : memref<8x128xf32, #tpu.memory_space<vmem>>, vector<8x128xf32>,
    return
  }
  func.func @transform_0(%arg0: i32) -> (i32, i32) {
    %c0_i32 = arith.constant 0 : i32
    %c0_i32_0 = arith.constant 0 : i32
    return %arg0, %c0_i32 : i32, i32
  }
  func.func @transform_1(%arg0: i32) -> (i32, i32) {
    %c0_i32 = arith.constant 0 : i32
    %c0_i32_0 = arith.constant 0 : i32
    %c0_i32_1 = arith.constant 0 : i32
    return %c0_i32, %c0_i32_0 : i32, i32
  }
  func.func @transform_2(%arg0: i32) -> (i32, i32) {
    %c0_i32 = arith.constant 0 : i32
    %c0_i32_0 = arith.constant 0 : i32
    %c0_i32_1 = arith.constant 0 : i32
    return %c0_i32, %c0_i32_0 : i32, i32
  }
  func.func @transform_3(%arg0: i32) -> (i32, i32) {
    %c0_i32 = arith.constant 0 : i32
    %c0_i32_0 = arith.constant 0 : i32
    %c0_i32_1 = arith.constant 0 : i32
    return %c0_i32, %c0_i32_0 : i32, i32
  }
  func.func @transform_4(%arg0: i32) -> (i32, i32) {
    %c0_i32 = arith.constant 0 : i32
    %c0_i32_0 = arith.constant 0 : i32
    %c0_i32_1 = arith.constant 0 : i32
    return %c0_i32, %c0_i32_0 : i32, i32
  }
  func.func @transform_5(%arg0: i32) -> (i32, i32) {
    %c0_i32 = arith.constant 0 : i32
    %c0_i32_0 = arith.constant 0 : i32
    return %arg0, %c0_i32 : i32, i32
  }
}

</mosaic_0001>

<llo_original>
// kernel: tpu_custom_call.1
$region0: #{tpu_custom_call.1}
  #allocation0 [shape = 'u32[]', space=smem, size = 0x4, offset = 0x4, fixed_abs, tag = 'smem constant byte address 0x4 - core index']
  #allocation1 [shape = 'u32[144,128]{1,0:T(1,128)}', space=vmem, size = 0x12000, scoped, tag = 'internal scratch']
  %s0 = inlined_call_operand.hbm [shape: bf16[8,32], index: 0, kind: input, shape index: {}]
  %s1 = inlined_call_operand.hbm [shape: bf16[32,256], index: 1, kind: input, shape index: {}]
  %s2 = inlined_call_operand.hbm [shape: bf16[256,128], index: 2, kind: input, shape index: {}]
  %s3 = inlined_call_operand.hbm [shape: bf16[128,128], index: 3, kind: input, shape index: {}]
  %s4 = inlined_call_operand.hbm [shape: f32[3,256], index: 4, kind: input, shape index: {}]
  %s5 = inlined_call_operand.hbm [shape: f32[8,128], index: 5, kind: output, shape index: {}]
  %s6 = sld [smem:[#allocation0]]
  $region50: #{tpu_custom_call.1} parent=0
    _
  %s8 = ssub.s32 1, %s6
  %s9 = scalar_select 0, %s8, %s6
  $region1: #{tpu_custom_call.1} parent=0
    #allocation2 [shape = 'u8[2048]{0}', space=vmem, size = 0x800, scoped, tag = 'input window, operand 0, single buffered']
    #allocation3 [shape = 's32[1]{0}', space=sflag, size = 0x4, scoped, tag = 'scoped memory for tpu_custom_call.1']
    #allocation4 [shape = 's32[1]{0}', space=sflag, size = 0x4, scoped, tag = 'scoped memory for tpu_custom_call.1']
    #allocation5 [shape = 'u8[16384]{0}', space=vmem, size = 0x4000, scoped, tag = 'input window, operand 1, single buffered']
    #allocation6 [shape = 's32[1]{0}', space=sflag, size = 0x4, scoped, tag = 'scoped memory for tpu_custom_call.1']
    #allocation7 [shape = 'u8[65536]{0}', space=vmem, size = 0x10000, scoped, tag = 'input window, operand 2, single buffered']
    #allocation8 [shape = 'u8[32768]{0}', space=vmem, size = 0x8000, scoped, tag = 'input window, operand 3, single buffered']
    #allocation9 [shape = 's32[1]{0}', space=sflag, size = 0x4, scoped, tag = 'scoped memory for tpu_custom_call.1']
    #allocation10 [shape = 'u8[4096]{0}', space=vmem, size = 0x1000, scoped, tag = 'input window, operand 4, single buffered']
    #allocation11 [shape = 'u8[4096]{0}', space=vmem, size = 0x1000, scoped, tag = 'output window, operand 0, single buffered']
    %10 = vsyncpa [#allocation3], 0
    %11 = vsyncpa [#allocation6], 0
    %12 = vsyncpa [#allocation9], 0
    %13 = vsyncpa [#allocation4], 0
    // Predicated region
    $region2: #{tpu_custom_call.1} parent=1 // pred_check
      _
    $region3: #{tpu_custom_call.1} parent=1 // pred_check_branch
      %15 = sbr.rel (0) target = $region5
    $region4: #{tpu_custom_call.1} parent=1 // pred_region
      %s17 = ssub.s32 64, 64
      %18 = vsyncadd [#allocation3], %s17
      %s20 = sshll.u32 [#allocation2], 4
      %s21 = int_to_ptr.vmem [resolvable:$true] %s20
      %23 = dma.hbm_to_vmem [thread:$0]  %s0, 64, %s21, [#allocation3]
    $region5: #{tpu_custom_call.1} parent=1 // pred_fallthru
      _
    // Predicated region
    $region6: #{tpu_custom_call.1} parent=1 // pred_check
      _
    $region7: #{tpu_custom_call.1} parent=1 // pred_check_branch
      %25 = sbr.rel (0) target = $region9
    $region8: #{tpu_custom_call.1} parent=1 // pred_region
      %s27 = ssub.s32 512, 512
      %28 = vsyncadd [#allocation6], %s27
      %s29 = sshll.u32 [#allocation5], 4
      %s30 = int_to_ptr.vmem [resolvable:$true] %s29
      %35 = dma.hbm_to_vmem [thread:$0]  %s1, 512, %s30, [#allocation6], 128, 128, 8
    $region9: #{tpu_custom_call.1} parent=1 // pred_fallthru
      _
    // Predicated region
    $region10: #{tpu_custom_call.1} parent=1 // pred_check
      _
    $region11: #{tpu_custom_call.1} parent=1 // pred_check_branch
      %37 = sbr.rel (0) target = $region13
    $region12: #{tpu_custom_call.1} parent=1 // pred_region
      %s39 = ssub.s32 2048, 2048
      %40 = vsyncadd [#allocation6], %s39
      %s41 = sshll.u32 [#allocation7], 4
      %s42 = int_to_ptr.vmem [resolvable:$true] %s41
      %47 = dma.hbm_to_vmem [thread:$0]  %s2, 2048, %s42, [#allocation6], 64, 64, 4
    $region13: #{tpu_custom_call.1} parent=1 // pred_fallthru
      _
    // Predicated region
    $region14: #{tpu_custom_call.1} parent=1 // pred_check
      _
    $region15: #{tpu_custom_call.1} parent=1 // pred_check_branch
      %49 = sbr.rel (0) target = $region17
    $region16: #{tpu_custom_call.1} parent=1 // pred_region
      %s51 = ssub.s32 1024, 1024
      %52 = vsyncadd [#allocation9], %s51
      %s53 = sshll.u32 [#allocation8], 4
      %s54 = int_to_ptr.vmem [resolvable:$true] %s53
      %59 = dma.hbm_to_vmem [thread:$0]  %s3, 1024, %s54, [#allocation9], 64, 64, 4
    $region17: #{tpu_custom_call.1} parent=1 // pred_fallthru
      _
    // Predicated region
    $region18: #{tpu_custom_call.1} parent=1 // pred_check
      _
    $region19: #{tpu_custom_call.1} parent=1 // pred_check_branch
      %61 = sbr.rel (0) target = $region21
    $region20: #{tpu_custom_call.1} parent=1 // pred_region
      %s63 = ssub.s32 128, 128
      %64 = vsyncadd [#allocation9], %s63
      %s66 = sshll.u32 [#allocation10], 4
      %s67 = int_to_ptr.vmem [resolvable:$true] %s66
      %69 = dma.hbm_to_vmem [thread:$0]  %s4, 128, %s67, [#allocation9]
    $region21: #{tpu_custom_call.1} parent=1 // pred_fallthru
      _
    // Predicated region
    $region22: #{tpu_custom_call.1} parent=1 // pred_check
      _
    $region23: #{tpu_custom_call.1} parent=1 // pred_check_branch
      %71 = sbr.rel (0) target = $region25
    $region24: #{tpu_custom_call.1} parent=1 // pred_region
      %72 = dma.done [#allocation3], 64
    $region25: #{tpu_custom_call.1} parent=1 // pred_fallthru
      _
    // Predicated region
    $region26: #{tpu_custom_call.1} parent=1 // pred_check
      _
    $region27: #{tpu_custom_call.1} parent=1 // pred_check_branch
      %74 = sbr.rel (0) target = $region29
    $region28: #{tpu_custom_call.1} parent=1 // pred_region
      %75 = dma.done [#allocation6], 512
    $region29: #{tpu_custom_call.1} parent=1 // pred_fallthru
      _
    // Predicated region
    $region30: #{tpu_custom_call.1} parent=1 // pred_check
      _
    $region31: #{tpu_custom_call.1} parent=1 // pred_check_branch
      %77 = sbr.rel (0) target = $region33
    $region32: #{tpu_custom_call.1} parent=1 // pred_region
      %78 = dma.done [#allocation6], 2048
    $region33: #{tpu_custom_call.1} parent=1 // pred_fallthru
      _
    // Predicated region
    $region34: #{tpu_custom_call.1} parent=1 // pred_check
      _
    $region35: #{tpu_custom_call.1} parent=1 // pred_check_branch
      %80 = sbr.rel (0) target = $region37
    $region36: #{tpu_custom_call.1} parent=1 // pred_region
      %81 = dma.done [#allocation9], 1024
    $region37: #{tpu_custom_call.1} parent=1 // pred_fallthru
      _
    // Predicated region
    $region38: #{tpu_custom_call.1} parent=1 // pred_check
      _
    $region39: #{tpu_custom_call.1} parent=1 // pred_check_branch
      %83 = sbr.rel (0) target = $region41
    $region40: #{tpu_custom_call.1} parent=1 // pred_region
      %84 = dma.done [#allocation9], 128
    $region41: #{tpu_custom_call.1} parent=1 // pred_fallthru
      _
    %v86 = vld [vmem:[#allocation2] sm:$0xf]
    %v87 = vld [vmem:[#allocation10] ss:$4 sm:$0x3]
    %v88 = vld [vmem:[#allocation10 + $0x1] sm:$0x1]
    %v89 = vld [vmem:[#allocation10 + $0x2] sm:$0x1]
    %v90 = vld [vmem:[#allocation5] sm:$0xff]
    %v91 = vld [vmem:[#allocation5 + $0x8] sm:$0xff]
    %v92 = vld [vmem:[#allocation5 + $0x10] sm:$0xff]
    %v93 = vld [vmem:[#allocation5 + $0x18] sm:$0xff]
    %v95 = vlaneseq
    %v96 = vshrl.u32 %v95, 7
    %v97 = vsub.s32 0, %v96
    %v98 = vrot.slane %v87, %v97
    %v99 = vlaneseq
    %v100 = vshrl.u32 %v99, 7
    %v101 = vsub.s32 1, %v100
    %v102 = vrot.slane %v87, %v101
    %v109 = vunpack.c.l.b16 %v90
    %v110 = vunpack.c.h.b16 %v90
    %v111 = vunpack.c.l.b16 %v91
    %v112 = vunpack.c.h.b16 %v91
    %v113 = vunpack.c.l.b16 %v92
    %v114 = vunpack.c.h.b16 %v92
    %v115 = vunpack.c.l.b16 %v93
    %v116 = vunpack.c.h.b16 %v93
    %v117 = vpack.c.b16 %v111, %v109
    %v118 = vpack.c.b16 %v112, %v110
    %v119 = vpack.c.b16 %v115, %v113
    %v120 = vpack.c.b16 %v116, %v114
    %vm125 = vcmask 261120
    %v127 = vsel %vm125, %v86, 0
    %129 = vmatprep.subr.bf16.mxu0 0
    %130 = vmatpush1.bf16.msra.mxu0 0
    %131 = vmatprep.subr.bf16.mxu0 0
    %132 = vmatpush1.bf16.msra.mxu0 0
    %133 = vmatprep.subr.bf16.mxu0 0
    %134 = vmatpush1.bf16.msra.mxu0 0
    %135 = vmatprep.subr.bf16.mxu0 0
    %136 = vmatpush1.bf16.msra.mxu0 0
    %137 = vmatprep.subr.bf16.mxu0 0
    %138 = vmatpush1.bf16.msra.mxu0 0
    %139 = vmatprep.subr.bf16.mxu0 0
    %140 = vmatpush1.bf16.msra.mxu0 0
    %141 = vmatprep.subr.bf16.mxu0 %v120
    %142 = vmatpush1.bf16.msra.mxu0 %v119
    %143 = vmatprep.subr.bf16.mxu0 %v118
    %144 = vmatpush1.bf16.msra.mxu0 %v117
    %145 = vmatprep.subr.bf16.mxu0 0
    %146 = vmatpush2.bf16.msra.mxu0 0
    %147 = vmatprep.subr.bf16.mxu0 0
    %148 = vmatpush2.bf16.msra.mxu0 0
    %149 = vmatprep.subr.bf16.mxu0 0
    %150 = vmatpush2.bf16.msra.mxu0 0
    %151 = vmatprep.subr.bf16.mxu0 0
    %152 = vmatpush2.bf16.msra.mxu0 0
    %153 = vmatprep.subr.bf16.mxu0 0
    %154 = vmatpush2.bf16.msra.mxu0 0
    %155 = vmatprep.subr.bf16.mxu0 0
    %156 = vmatpush2.bf16.msra.mxu0 0
    %157 = vmatprep.subr.bf16.mxu0 0
    %158 = vmatpush2.bf16.msra.mxu0 0
    %159 = vmatprep.subr.bf16.mxu0 0
    %160 = vmatpush2.bf16.msra.mxu0 0
    %161 = vmatprep.mubr.bf16.mxu0 0
    %162 = vmatmul.mubr.bf16.gmra.mxu0 %v127
    %v163 = vpop.f32.mrf.mxu0
    %v164 = vadd.f32 %v98, %v163
    %v165 = vpop.f32.mrf.mxu0
    %v166 = vadd.f32 %v102, %v165
    %v167 = vpop.f32.mrf.mxu0
    %v168 = vpop.f32.mrf.mxu0
    %169 = vdwg.mxu0
    %v170 = vtanh.pop %v164
    %v171 = vtanh.pop %v166
    %v172 = vpack.c.bf16 %v170, %v170
    %v173 = vpack.c.bf16 %v171, %v171
    %v174 = vld [vmem:[#allocation7] sm:$0xf]
    %v175 = vld [vmem:[#allocation7 + $0x4] sm:$0xf]
    %v176 = vld [vmem:[#allocation7 + $0x8] sm:$0xf]
    %v177 = vld [vmem:[#allocation7 + $0xc] sm:$0xf]
    %v178 = vld [vmem:[#allocation7 + $0x10] sm:$0xf]
    %v179 = vld [vmem:[#allocation7 + $0x14] sm:$0xf]
    %v180 = vld [vmem:[#allocation7 + $0x18] sm:$0xf]
    %v181 = vld [vmem:[#allocation7 + $0x1c] sm:$0xf]
    %v182 = vld [vmem:[#allocation7 + $0x20] sm:$0xf]
    %v183 = vld [vmem:[#allocation7 + $0x24] sm:$0xf]
    %v184 = vld [vmem:[#allocation7 + $0x28] sm:$0xf]
    %v185 = vld [vmem:[#allocation7 + $0x2c] sm:$0xf]
    %v186 = vld [vmem:[#allocation7 + $0x30] sm:$0xf]
    %v187 = vld [vmem:[#allocation7 + $0x34] sm:$0xf]
    %v188 = vld [vmem:[#allocation7 + $0x38] sm:$0xf]
    %v189 = vld [vmem:[#allocation7 + $0x3c] sm:$0xf]
    %v190 = vld [vmem:[#allocation7 + $0x40] sm:$0xf]
    %v191 = vld [vmem:[#allocation7 + $0x44] sm:$0xf]
    %v192 = vld [vmem:[#allocation7 + $0x48] sm:$0xf]
    %v193 = vld [vmem:[#allocation7 + $0x4c] sm:$0xf]
    %v194 = vld [vmem:[#allocation7 + $0x50] sm:$0xf]
    %v195 = vld [vmem:[#allocation7 + $0x54] sm:$0xf]
    %v196 = vld [vmem:[#allocation7 + $0x58] sm:$0xf]
    %v197 = vld [vmem:[#allocation7 + $0x5c] sm:$0xf]
    %v198 = vld [vmem:[#allocation7 + $0x60] sm:$0xf]
    %v199 = vld [vmem:[#allocation7 + $0x64] sm:$0xf]
    %v200 = vld [vmem:[#allocation7 + $0x68] sm:$0xf]
    %v201 = vld [vmem:[#allocation7 + $0x6c] sm:$0xf]
    %v202 = vld [vmem:[#allocation7 + $0x70] sm:$0xf]
    %v203 = vld [vmem:[#allocation7 + $0x74] sm:$0xf]
    %v204 = vld [vmem:[#allocation7 + $0x78] sm:$0xf]
    %v205 = vld [vmem:[#allocation7 + $0x7c] sm:$0xf]
    %v206 = vlaneseq
    %v207 = vshrl.u32 %v206, 7
    %v208 = vsub.s32 0, %v207
    %v209 = vrot.slane %v88, %v208
    %v242 = vunpack.c.l.b16 %v174
    %v243 = vunpack.c.l.b16 %v175
    %v244 = vunpack.c.l.b16 %v176
    %v245 = vunpack.c.l.b16 %v177
    %v246 = vunpack.c.l.b16 %v178
    %v247 = vunpack.c.l.b16 %v179
    %v248 = vunpack.c.l.b16 %v180
    %v249 = vunpack.c.l.b16 %v181
    %v250 = vunpack.c.l.b16 %v182
    %v251 = vunpack.c.l.b16 %v183
    %v252 = vunpack.c.l.b16 %v184
    %v253 = vunpack.c.l.b16 %v185
    %v254 = vunpack.c.l.b16 %v186
    %v255 = vunpack.c.l.b16 %v187
    %v256 = vunpack.c.l.b16 %v188
    %v257 = vunpack.c.l.b16 %v189
    %v258 = vunpack.c.l.b16 %v190
    %v259 = vunpack.c.l.b16 %v191
    %v260 = vunpack.c.l.b16 %v192
    %v261 = vunpack.c.l.b16 %v193
    %v262 = vunpack.c.l.b16 %v194
    %v263 = vunpack.c.l.b16 %v195
    %v264 = vunpack.c.l.b16 %v196
    %v265 = vunpack.c.l.b16 %v197
    %v266 = vunpack.c.l.b16 %v198
    %v267 = vunpack.c.l.b16 %v199
    %v268 = vunpack.c.l.b16 %v200
    %v269 = vunpack.c.l.b16 %v201
    %v270 = vunpack.c.l.b16 %v202
    %v271 = vunpack.c.l.b16 %v203
    %v272 = vunpack.c.l.b16 %v204
    %v273 = vunpack.c.l.b16 %v205
    %v274 = vpack.c.b16 %v243, %v242
    %v275 = vpack.c.b16 %v245, %v244
    %v276 = vpack.c.b16 %v247, %v246
    %v277 = vpack.c.b16 %v249, %v248
    %v278 = vpack.c.b16 %v251, %v250
    %v279 = vpack.c.b16 %v253, %v252
    %v280 = vpack.c.b16 %v255, %v254
    %v281 = vpack.c.b16 %v257, %v256
    %v282 = vpack.c.b16 %v259, %v258
    %v283 = vpack.c.b16 %v261, %v260
    %v284 = vpack.c.b16 %v263, %v262
    %v285 = vpack.c.b16 %v265, %v264
    %v286 = vpack.c.b16 %v267, %v266
    %v287 = vpack.c.b16 %v269, %v268
    %v288 = vpack.c.b16 %v271, %v270
    %v289 = vpack.c.b16 %v273, %v272
    %306 = vmatprep.subr.bf16.mxu0 0
    %307 = vmatpush1.bf16.msra.mxu0 %v281
    %308 = vmatprep.subr.bf16.mxu0 0
    %309 = vmatpush1.bf16.msra.mxu0 %v280
    %310 = vmatprep.subr.bf16.mxu0 0
    %311 = vmatpush1.bf16.msra.mxu0 %v279
    %312 = vmatprep.subr.bf16.mxu0 0
    %313 = vmatpush1.bf16.msra.mxu0 %v278
    %314 = vmatprep.subr.bf16.mxu0 0
    %315 = vmatpush1.bf16.msra.mxu0 %v277
    %316 = vmatprep.subr.bf16.mxu0 0
    %317 = vmatpush1.bf16.msra.mxu0 %v276
    %318 = vmatprep.subr.bf16.mxu0 0
    %319 = vmatpush1.bf16.msra.mxu0 %v275
    %320 = vmatprep.subr.bf16.mxu0 0
    %321 = vmatpush1.bf16.msra.mxu0 %v274
    %322 = vmatprep.subr.bf16.mxu0 0
    %323 = vmatpush2.bf16.msra.mxu0 %v289
    %324 = vmatprep.subr.bf16.mxu0 0
    %325 = vmatpush2.bf16.msra.mxu0 %v288
    %326 = vmatprep.subr.bf16.mxu0 0
    %327 = vmatpush2.bf16.msra.mxu0 %v287
    %328 = vmatprep.subr.bf16.mxu0 0
    %329 = vmatpush2.bf16.msra.mxu0 %v286
    %330 = vmatprep.subr.bf16.mxu0 0
    %331 = vmatpush2.bf16.msra.mxu0 %v285
    %332 = vmatprep.subr.bf16.mxu0 0
    %333 = vmatpush2.bf16.msra.mxu0 %v284
    %334 = vmatprep.subr.bf16.mxu0 0
    %335 = vmatpush2.bf16.msra.mxu0 %v283
    %336 = vmatprep.subr.bf16.mxu0 0
    %337 = vmatpush2.bf16.msra.mxu0 %v282
    %338 = vmatprep.mubr.bf16.mxu0 %v173
    %339 = vmatmul.mubr.bf16.gmra.mxu0 %v172
    %v340 = vpop.f32.mrf.mxu0
    %v341 = vadd.f32 %v209, %v340
    %v342 = vpop.f32.mrf.mxu0
    %v343 = vpop.f32.mrf.mxu0
    %v344 = vpop.f32.mrf.mxu0
    %345 = vdwg.mxu0
    %v346 = vtanh.pop %v341
    %v347 = vpack.c.bf16 %v346, %v346
    %v348 = vld [vmem:[#allocation8] sm:$0xf]
    %v349 = vld [vmem:[#allocation8 + $0x4] sm:$0xf]
    %v350 = vld [vmem:[#allocation8 + $0x8] sm:$0xf]
    %v351 = vld [vmem:[#allocation8 + $0xc] sm:$0xf]
    %v352 = vld [vmem:[#allocation8 + $0x10] sm:$0xf]
    %v353 = vld [vmem:[#allocation8 + $0x14] sm:$0xf]
    %v354 = vld [vmem:[#allocation8 + $0x18] sm:$0xf]
    %v355 = vld [vmem:[#allocation8 + $0x1c] sm:$0xf]
    %v356 = vld [vmem:[#allocation8 + $0x20] sm:$0xf]
    %v357 = vld [vmem:[#allocation8 + $0x24] sm:$0xf]
    %v358 = vld [vmem:[#allocation8 + $0x28] sm:$0xf]
    %v359 = vld [vmem:[#allocation8 + $0x2c] sm:$0xf]
    %v360 = vld [vmem:[#allocation8 + $0x30] sm:$0xf]
    %v361 = vld [vmem:[#allocation8 + $0x34] sm:$0xf]
    %v362 = vld [vmem:[#allocation8 + $0x38] sm:$0xf]
    %v363 = vld [vmem:[#allocation8 + $0x3c] sm:$0xf]
    %v364 = vlaneseq
    %v365 = vshrl.u32 %v364, 7
    %v366 = vsub.s32 0, %v365
    %v367 = vrot.slane %v89, %v366
    %v384 = vunpack.c.l.b16 %v348
    %v385 = vunpack.c.l.b16 %v349
    %v386 = vunpack.c.l.b16 %v350
    %v387 = vunpack.c.l.b16 %v351
    %v388 = vunpack.c.l.b16 %v352
    %v389 = vunpack.c.l.b16 %v353
    %v390 = vunpack.c.l.b16 %v354
    %v391 = vunpack.c.l.b16 %v355
    %v392 = vunpack.c.l.b16 %v356
    %v393 = vunpack.c.l.b16 %v357
    %v394 = vunpack.c.l.b16 %v358
    %v395 = vunpack.c.l.b16 %v359
    %v396 = vunpack.c.l.b16 %v360
    %v397 = vunpack.c.l.b16 %v361
    %v398 = vunpack.c.l.b16 %v362
    %v399 = vunpack.c.l.b16 %v363
    %v400 = vpack.c.b16 %v385, %v384
    %v401 = vpack.c.b16 %v387, %v386
    %v402 = vpack.c.b16 %v389, %v388
    %v403 = vpack.c.b16 %v391, %v390
    %v404 = vpack.c.b16 %v393, %v392
    %v405 = vpack.c.b16 %v395, %v394
    %v406 = vpack.c.b16 %v397, %v396
    %v407 = vpack.c.b16 %v399, %v398
    %416 = vmatprep.subr.bf16.mxu0 0
    %417 = vmatpush1.bf16.msra.mxu0 %v407
    %418 = vmatprep.subr.bf16.mxu0 0
    %419 = vmatpush1.bf16.msra.mxu0 %v406
    %420 = vmatprep.subr.bf16.mxu0 0
    %421 = vmatpush1.bf16.msra.mxu0 %v405
    %422 = vmatprep.subr.bf16.mxu0 0
    %423 = vmatpush1.bf16.msra.mxu0 %v404
    %424 = vmatprep.subr.bf16.mxu0 0
    %425 = vmatpush1.bf16.msra.mxu0 %v403
    %426 = vmatprep.subr.bf16.mxu0 0
    %427 = vmatpush1.bf16.msra.mxu0 %v402
    %428 = vmatprep.subr.bf16.mxu0 0
    %429 = vmatpush1.bf16.msra.mxu0 %v401
    %430 = vmatprep.subr.bf16.mxu0 0
    %431 = vmatpush1.bf16.msra.mxu0 %v400
    %432 = vmatprep.subr.bf16.mxu0 0
    %433 = vmatpush2.bf16.msra.mxu0 0
    %434 = vmatprep.subr.bf16.mxu0 0
    %435 = vmatpush2.bf16.msra.mxu0 0
    %436 = vmatprep.subr.bf16.mxu0 0
    %437 = vmatpush2.bf16.msra.mxu0 0
    %438 = vmatprep.subr.bf16.mxu0 0
    %439 = vmatpush2.bf16.msra.mxu0 0
    %440 = vmatprep.subr.bf16.mxu0 0
    %441 = vmatpush2.bf16.msra.mxu0 0
    %442 = vmatprep.subr.bf16.mxu0 0
    %443 = vmatpush2.bf16.msra.mxu0 0
    %444 = vmatprep.subr.bf16.mxu0 0
    %445 = vmatpush2.bf16.msra.mxu0 0
    %446 = vmatprep.subr.bf16.mxu0 0
    %447 = vmatpush2.bf16.msra.mxu0 0
    %448 = vmatprep.mubr.bf16.mxu0 0
    %449 = vmatmul.mubr.bf16.gmra.mxu0 %v347
    %v450 = vpop.f32.mrf.mxu0
    %v451 = vadd.f32 %v367, %v450
    %v452 = vpop.f32.mrf.mxu0
    %v453 = vpop.f32.mrf.mxu0
    %v454 = vpop.f32.mrf.mxu0
    %455 = vdwg.mxu0
    %v456 = vlaneseq
    %v457 = vand.u32 %v456, 127
    %vm458 = vcmp.lt.s32.totalorder %v457, 4
    %v459 = vtanh.pop %v451
    %v460 = vsel %vm458, %v459, %v451
    %461 = vst [vmem:[#allocation11] sm:$0xff] %v460
    // Predicated region
    $region42: #{tpu_custom_call.1} parent=1 // pred_check
      _
    $region43: #{tpu_custom_call.1} parent=1 // pred_check_branch
      %463 = sbr.rel (0) target = $region45
    $region44: #{tpu_custom_call.1} parent=1 // pred_region
      %s465 = ssub.s32 128, 128
      %466 = vsyncadd [#allocation4], %s465
      %s468 = sshll.u32 [#allocation11], 4
      %s469 = int_to_ptr.vmem [resolvable:$true] %s468
      %471 = dma.vmem_to_hbm [thread:$0]  %s469, 128, %s5, [#allocation4]
    $region45: #{tpu_custom_call.1} parent=1 // pred_fallthru
      _
    // Predicated region
    $region46: #{tpu_custom_call.1} parent=1 // pred_check
      _
    $region47: #{tpu_custom_call.1} parent=1 // pred_check_branch
      %473 = sbr.rel (0) target = $region49
    $region48: #{tpu_custom_call.1} parent=1 // pred_region
      %474 = dma.done [#allocation4], 128
    $region49: #{tpu_custom_call.1} parent=1 // pred_fallthru
      _
    %475 = vsyncpa [#allocation3], 1
    %476 = vsyncpa [#allocation6], 1
    %477 = vsyncpa [#allocation9], 1
    %478 = vsyncpa [#allocation4], 1

</llo_original>
